<compile_context>
chip_gen: v7x
topology: tpu7x:2x2x1
jax: 0.10.0
libtpu: 0.0.40
codegen_flags: <defaults>
</compile_context>

<pallas_src>
import jax
import jax.numpy as jnp
from jax.experimental import pallas as pl
from jax.experimental.pallas import tpu as pltpu

LANE = 128
EPS = 1e-5


def _round_up(x, m):
    return ((x + m - 1) // m) * m


def conv_bn_relu_gap_kernel(x_ref, w_ref, bias_ref, out_ref):
    """One image per grid step (batch axis = grid, 'parallel').

    x_ref:    (1, H*W, K_PAD)    bf16 im2col patches (K = 9*Cin zero-padded to 128)
    w_ref:    (K_PAD, COUT_PAD)  bf16 conv weights, BN scale folded, im2col row layout
    bias_ref: (1, COUT_PAD)      f32  folded BN bias
    out_ref:  (1, 1, COUT_PAD)   f32  per-image sum_{h,w} ReLU(conv+bias)  (lane-dense)
    """
    # Single lane-dense MXU matmul: (H*W, 128) x (128, COUT) with f32 accumulation.
    y = jnp.dot(x_ref[0], w_ref[...], preferred_element_type=jnp.float32)
    # Folded BN bias + ReLU (VPU); result stays a local value — no scratch RMW.
    y = jnp.maximum(y + bias_ref[...], 0.0)
    # Global-average-pool numerator (XLU reduce); 1/(H*W) is folded into the FC
    # weights in the wrapper. One lane-dense (1, 128) store per image.
    out_ref[0] = jnp.sum(y, axis=0, keepdims=True)


@jax.jit
def custom_model_forward(x_nchw, params):
    """x_nchw: (N, Cin, H, W) float32. Returns (N, num_classes) float32."""
    conv_w, gamma, beta, mean, var, fc_w, fc_b = params
    N, Cin, H, W = x_nchw.shape
    Cout = conv_w.shape[3]
    HW = H * W
    K = 9 * Cin
    KP = _round_up(K, LANE)
    COUT = _round_up(Cout, LANE)

    # ---- fold inference BatchNorm into the conv weight/bias (both linear) ----
    scale = gamma / jnp.sqrt(var + EPS)                           # (Cout,)
    w_fold = conv_w * scale[None, None, None, :]                  # (3,3,Cin,Cout)
    b_fold = beta - mean * scale                                  # (Cout,)

    # ---- im2col in the wrapper: (N, H*W, 9*Cin), K padded to 128, bf16 ----
    x_nhwc = jnp.transpose(x_nchw, (0, 2, 3, 1))                  # (N,H,W,Cin)
    xp = jnp.pad(x_nhwc, ((0, 0), (1, 1), (1, 1), (0, 0)))        # (N,H+2,W+2,Cin)
    taps = [xp[:, kh:kh + H, kw:kw + W, :] for kh in range(3) for kw in range(3)]
    patches = jnp.concatenate(taps, axis=-1).reshape(N, HW, K)    # (N,HW,9*Cin)
    x_pad = jnp.pad(patches, ((0, 0), (0, 0), (0, KP - K))).astype(jnp.bfloat16)

    # Conv weights in matching im2col row order (kh, kw, cin), padded + bf16.
    w_mat = w_fold.reshape(K, Cout)
    w_pad = jnp.pad(w_mat, ((0, KP - K), (0, COUT - Cout))).astype(jnp.bfloat16)
    b_pad = jnp.pad(b_fold, (0, COUT - Cout)).reshape(1, COUT).astype(jnp.float32)

    pooled_sum = pl.pallas_call(
        conv_bn_relu_gap_kernel,
        out_shape=jax.ShapeDtypeStruct((N, 1, COUT), jnp.float32),
        grid=(N,),
        in_specs=[
            pl.BlockSpec((1, HW, KP), lambda b: (b, 0, 0)),       # per-image patches
            pl.BlockSpec((KP, COUT), lambda b: (0, 0)),           # conv weights (resident)
            pl.BlockSpec((1, COUT), lambda b: (0, 0)),            # folded BN bias
        ],
        out_specs=pl.BlockSpec((1, 1, COUT), lambda b: (b, 0, 0)),  # lane-dense pooled sums
        compiler_params=pltpu.CompilerParams(
            dimension_semantics=("parallel",)),                   # >=2 steps -> 2 TCs on v7x
    )(x_pad, w_pad, b_pad)

    pooled_sum = pooled_sum[:, 0, :Cout]                          # (N, Cout)
    # GAP 1/(H*W) folded into the FC weights; batched (N,Cout)x(Cout,NC) matmul in XLA
    # (per perf review: an M=1 per-image FC inside the kernel is pure MXU fill/drain).
    logits = pooled_sum @ (fc_w * (1.0 / float(HW))) + fc_b[None, :]
    return logits


def reference_forward(x_nchw, params):
    """Pure-JAX f32 reference of the UN-folded math (conv -> BN -> ReLU -> GAP -> FC)."""
    conv_w, gamma, beta, mean, var, fc_w, fc_b = params
    N, Cin, H, W = x_nchw.shape
    Cout = conv_w.shape[3]
    x = jnp.transpose(x_nchw, (0, 2, 3, 1))
    xp = jnp.pad(x, ((0, 0), (1, 1), (1, 1), (0, 0)))
    acc = jnp.zeros((N, H, W, Cout), jnp.float32)
    for kh in range(3):
        for kw in range(3):
            acc = acc + jnp.einsum('nhwc,co->nhwo',
                                   xp[:, kh:kh + H, kw:kw + W, :], conv_w[kh, kw])
    y = (acc - mean) * (gamma / jnp.sqrt(var + EPS)) + beta
    y = jnp.maximum(y, 0.0)
    pooled = y.mean(axis=(1, 2))
    return pooled @ fc_w + fc_b[None, :]


def init_params(key, cin, cout, num_classes):
    ks = jax.random.split(key, 7)
    conv_w = jax.random.normal(ks[0], (3, 3, cin, cout), jnp.float32) * 0.1
    gamma = 1.0 + 0.1 * jax.random.normal(ks[1], (cout,), jnp.float32)
    beta = 0.1 * jax.random.normal(ks[2], (cout,), jnp.float32)
    running_mean = 0.1 * jax.random.normal(ks[3], (cout,), jnp.float32)
    running_var = 1.0 + 0.1 * jax.random.uniform(ks[4], (cout,), jnp.float32)
    fc_w = jax.random.normal(ks[5], (cout, num_classes), jnp.float32) * 0.1
    fc_b = 0.1 * jax.random.normal(ks[6], (num_classes,), jnp.float32)
    return conv_w, gamma, beta, running_mean, running_var, fc_w, fc_b


if __name__ == "__main__":
    key = jax.random.PRNGKey(0)
    kx, kp = jax.random.split(key)

    # Small shapes consistent with a CNN image-classifier forward pass.
    N, Cin, H, W = 2, 4, 16, 16
    Cout, num_classes = 8, 10

    x = jax.random.normal(kx, (N, Cin, H, W), jnp.float32)
    params = init_params(kp, Cin, Cout, num_classes)

    out = jax.block_until_ready(custom_model_forward(x, params))
    ref = reference_forward(x, params)

    assert out.shape == (N, num_classes)
    # Tolerance accounts for bf16 MXU operands in the conv path (f32 accumulation).
    max_err = float(jnp.max(jnp.abs(out - ref)))
    assert jnp.allclose(out, ref, atol=3e-2, rtol=3e-2), \
        f"mismatch vs reference, max abs err={max_err}"

    print("KERNEL_OK")
</pallas_src>

<mosaic_0001>
module attributes {stable_mosaic.version = 11 : i64} {
  func.func @conv_bn_relu_gap_kernel(%arg0: i32, %arg1: memref<1x256x128xbf16, #tpu.memory_space<vmem>>, %arg2: memref<128x128xbf16, #tpu.memory_space<vmem>>, %arg3: memref<1x128xf32, #tpu.memory_space<vmem>>, %arg4: memref<1x1x128xf32, #tpu.memory_space<vmem>>) attributes {dimension_semantics = [#tpu.dimension_semantics<parallel>], iteration_bounds = array<i64: 2>, scalar_prefetch = 0 : i64, scratch_operands = 0 : i64, tpu.core_type = #tpu.core_type<tc>, window_params = [{transform_indices = @transform_0, window_bounds = array<i64: 1, 256, 128>}, {pipeline_mode = #tpu.pipeline_mode<synchronous>, transform_indices = @transform_1, window_bounds = array<i64: 128, 128>}, {pipeline_mode = #tpu.pipeline_mode<synchronous>, transform_indices = @transform_2, window_bounds = array<i64: 1, 128>}, {transform_indices = @transform_3, window_bounds = array<i64: 1, 1, 128>}]} {
    %c0 = arith.constant 0 : index
    %c0_0 = arith.constant 0 : index
    %c0_1 = arith.constant 0 : index
    %0 = vector.load %arg1[%c0, %c0_0, %c0_1] : memref<1x256x128xbf16, #tpu.memory_space<vmem>>, vector<1x256x128xbf16>
    %1 = vector.shape_cast %0 : vector<1x256x128xbf16> to vector<256x128xbf16>
    %c0_2 = arith.constant 0 : index
    %c0_3 = arith.constant 0 : index
    %2 = vector.load %arg2[%c0_2, %c0_3] : memref<128x128xbf16, #tpu.memory_space<vmem>>, vector<128x128xbf16>
    %cst = arith.constant dense<0.000000e+00> : vector<256x128xf32>
    %3 = tpu.matmul %1, %2, %cst {dimension_numbers = #tpu.dot_dimension_numbers<[1], [0], [0], [1], [0, 0, 1, 1], [], []>} : vector<256x128xbf16>, vector<128x128xbf16>, vector<256x128xf32> -> vector<256x128xf32>
    %c0_4 = arith.constant 0 : index
    %c0_5 = arith.constant 0 : index
    %4 = vector.load %arg3[%c0_4, %c0_5] : memref<1x128xf32, #tpu.memory_space<vmem>>, vector<1x128xf32>
    %5 = vector.broadcast %4 : vector<1x128xf32> to vector<256x128xf32>
    %6 = arith.addf %3, %5 : vector<256x128xf32>
    %cst_6 = arith.constant 0.000000e+00 : f32
    %7 = vector.broadcast %cst_6 : f32 to vector<256x128xf32>
    %8 = arith.maximumf %6, %7 : vector<256x128xf32>
    %cst_7 = arith.constant dense<0.000000e+00> : vector<128xf32>
    %9 = vector.multi_reduction <add>, %8, %cst_7 [0] : vector<256x128xf32> to vector<128xf32>
    %10 = vector.shape_cast %9 : vector<128xf32> to vector<1x128xf32>
    %c0_8 = arith.constant 0 : index
    %c0_9 = arith.constant 0 : index
    %c0_10 = arith.constant 0 : index
    %11 = vector.load %arg4[%c0_8, %c0_9, %c0_10] : memref<1x1x128xf32, #tpu.memory_space<vmem>>, vector<1x1x128xf32>
    %12 = vector.shape_cast %11 : vector<1x1x128xf32> to vector<1x128xf32>
    %13 = vector.shape_cast %10 : vector<1x128xf32> to vector<1x1x128xf32>
    tpu.vector_store %arg4[%c0_8, %c0_9, %c0_10], %13 {strides = array<i32>} : memref<1x1x128xf32, #tpu.memory_space<vmem>>, vector<1x1x128xf32>,
    return
  }
  func.func @transform_0(%arg0: i32) -> (i32, i32, i32) {
    %c0_i32 = arith.constant 0 : i32
    %c0_i32_0 = arith.constant 0 : i32
    %c0_i32_1 = arith.constant 0 : i32
    return %arg0, %c0_i32, %c0_i32_0 : i32, i32, i32
  }
  func.func @transform_1(%arg0: i32) -> (i32, i32) {
    %c0_i32 = arith.constant 0 : i32
    %c0_i32_0 = arith.constant 0 : i32
    %c0_i32_1 = arith.constant 0 : i32
    return %c0_i32, %c0_i32_0 : i32, i32
  }
  func.func @transform_2(%arg0: i32) -> (i32, i32) {
    %c0_i32 = arith.constant 0 : i32
    %c0_i32_0 = arith.constant 0 : i32
    %c0_i32_1 = arith.constant 0 : i32
    return %c0_i32, %c0_i32_0 : i32, i32
  }
  func.func @transform_3(%arg0: i32) -> (i32, i32, i32) {
    %c0_i32 = arith.constant 0 : i32
    %c0_i32_0 = arith.constant 0 : i32
    %c0_i32_1 = arith.constant 0 : i32
    return %arg0, %c0_i32, %c0_i32_0 : i32, i32, i32
  }
}

</mosaic_0001>

<llo_original>
// kernel: custom_model_forward.1
$region0: #{custom_model_forward.1}
  #allocation0 [shape = 'u32[]', space=smem, size = 0x4, offset = 0x4, fixed_abs, tag = 'smem constant byte address 0x4 - core index']
  #allocation1 [shape = 'u32[144,128]{1,0:T(1,128)}', space=vmem, size = 0x12000, scoped, tag = 'internal scratch']
  %s0 = inlined_call_operand.vmem [shape: bf16[2,256,128], index: 0, kind: input, shape index: {}]
  %s1 = inlined_call_operand.vmem [shape: bf16[128,128], index: 1, kind: input, shape index: {}]
  %s2 = inlined_call_operand.vmem [shape: f32[1,128], index: 2, kind: input, shape index: {}]
  %s3 = inlined_call_operand.vmem [shape: f32[2,1,128], index: 3, kind: output, shape index: {}]
  %s4 = sld [smem:[#allocation0]]
  $region45: #{custom_model_forward.1} parent=0
    _
  %s6 = ssub.s32 1, %s4
  %s7 = scalar_select 0, %s6, %s4
  loop: start=0, step=1, limit=4
  $region2: #{custom_model_forward.1} parent=0 // loop_pre_header
    _
  $region3: #{custom_model_forward.1} parent=0 // loop_header
    %s9 = sphi 0, %s13
    %p10 = scmp.ge.s32.totalorder %s9, 4
    %s19 = sphi 0, %s21
    %s22 = sphi 0, %s19
    %s23 = sphi 0, %s22
    %s39 = sphi 0, %s23
    %s43 = sphi 0, %s43
    %s45 = sphi 0, %s43
    %s46 = sphi 0, %s45
    %s60 = sphi 0, %s46
    %s64 = sphi 0, %s64
    %s66 = sphi 0, %s64
    %s67 = sphi 0, %s66
    %s81 = sphi 0, %s67
    %s87 = sphi 0, %s89
    %s90 = sphi 0, %s87
    %s91 = sphi 0, %s90
    %s107 = sphi 0, %s91
  $region4: #{custom_model_forward.1} parent=0 // loop_header_branch
    %12 = sbr.rel (%p10) target = $region8
  $region5: #{custom_model_forward.1} parent=0 // loop_body
    %s14 = ssub.s32 %s9, 1
    %s15 = ssub.s32 %s9, 2
    %s16 = sadd.s32 %s9, 1
    %s17 = ssub.s32 %s9, %s16
    %p18 = scmp.eq.s32.totalorder %s17, 0
    %s20 = sadd.s32 %s19, 1
    %s21 = scalar_select %p18, %s19, %s20
    %p24 = pneg %p18
    %p25 = scmp.eq.s32.totalorder %s9, 1
    %p26 = por %p24, %p25
    %p27 = scmp.ne.s32.totalorder %s19, %s22
    %p28 = scmp.eq.s32.totalorder %s9, 0
    %p29 = por %p27, %p28
    %p30 = scmp.ne.s32.totalorder %s19, %s22
    %p31 = scmp.eq.s32.totalorder %s14, 1
    %p32 = por %p30, %p31
    %p33 = scmp.ne.s32.totalorder %s22, %s23
    %p34 = scmp.eq.s32.totalorder %s14, 0
    %p35 = por %p33, %p34
    %p36 = scmp.ne.s32.totalorder %s22, %s23
    %p37 = scmp.eq.s32.totalorder %s15, 1
    %p38 = por %p36, %p37
    %p40 = scmp.ne.s32.totalorder %s23, %s39
    %p41 = scmp.eq.s32.totalorder %s15, 0
    %p42 = por %p40, %p41
    %s44 = sadd.s32 %s43, 1
    %p47 = scmp.eq.s32.totalorder %s9, 1
    %p48 = scmp.ne.s32.totalorder %s43, %s45
    %p49 = scmp.eq.s32.totalorder %s9, 0
    %p50 = por %p48, %p49
    %p51 = scmp.ne.s32.totalorder %s43, %s45
    %p52 = scmp.eq.s32.totalorder %s14, 1
    %p53 = por %p51, %p52
    %p54 = scmp.ne.s32.totalorder %s45, %s46
    %p55 = scmp.eq.s32.totalorder %s14, 0
    %p56 = por %p54, %p55
    %p57 = scmp.ne.s32.totalorder %s45, %s46
    %p58 = scmp.eq.s32.totalorder %s15, 1
    %p59 = por %p57, %p58
    %p61 = scmp.ne.s32.totalorder %s46, %s60
    %p62 = scmp.eq.s32.totalorder %s15, 0
    %p63 = por %p61, %p62
    %s65 = sadd.s32 %s64, 1
    %p68 = scmp.eq.s32.totalorder %s9, 1
    %p69 = scmp.ne.s32.totalorder %s64, %s66
    %p70 = scmp.eq.s32.totalorder %s9, 0
    %p71 = por %p69, %p70
    %p72 = scmp.ne.s32.totalorder %s64, %s66
    %p73 = scmp.eq.s32.totalorder %s14, 1
    %p74 = por %p72, %p73
    %p75 = scmp.ne.s32.totalorder %s66, %s67
    %p76 = scmp.eq.s32.totalorder %s14, 0
    %p77 = por %p75, %p76
    %p78 = scmp.ne.s32.totalorder %s66, %s67
    %p79 = scmp.eq.s32.totalorder %s15, 1
    %p80 = por %p78, %p79
    %p82 = scmp.ne.s32.totalorder %s67, %s81
    %p83 = scmp.eq.s32.totalorder %s15, 0
    %p84 = por %p82, %p83
    %s85 = ssub.s32 %s9, %s16
    %p86 = scmp.eq.s32.totalorder %s85, 0
    %s88 = sadd.s32 %s87, 1
    %s89 = scalar_select %p86, %s87, %s88
    %p92 = pneg %p86
    %p93 = scmp.eq.s32.totalorder %s9, 1
    %p94 = por %p92, %p93
    %p95 = scmp.ne.s32.totalorder %s87, %s90
    %p96 = scmp.eq.s32.totalorder %s9, 0
    %p97 = por %p95, %p96
    %p98 = scmp.ne.s32.totalorder %s87, %s90
    %p99 = scmp.eq.s32.totalorder %s14, 1
    %p100 = por %p98, %p99
    %p101 = scmp.ne.s32.totalorder %s90, %s91
    %p102 = scmp.eq.s32.totalorder %s14, 0
    %p103 = por %p101, %p102
    %p104 = scmp.ne.s32.totalorder %s90, %s91
    %p105 = scmp.eq.s32.totalorder %s15, 1
    %p106 = por %p104, %p105
    %p108 = scmp.ne.s32.totalorder %s91, %s107
    %p109 = scmp.eq.s32.totalorder %s15, 0
    %p110 = por %p108, %p109
    %p111 = scmp.le.s32.totalorder 1, %s9
    %p112 = scmp.lt.s32.totalorder %s9, 3
    %p113 = pnand %p111, %p112
    %p114 = pneg %p113
    // Predicated region
    $region9: #{custom_model_forward.1} parent=5 // pred_check
      _
    $region10: #{custom_model_forward.1} parent=5 // pred_check_branch
      %116 = sbr.rel (%p113) target = $region12
    $region11: #{custom_model_forward.1} parent=5 // pred_region
      %s117 = ssub.s32 %s9, 1
      // Predicated region
      $region13: #{custom_model_forward.1} parent=11 // pred_check
        %p118 = pneg %p56
      $region14: #{custom_model_forward.1} parent=11 // pred_check_branch
        %120 = sbr.rel (%p118) target = $region16
      $region15: #{custom_model_forward.1} parent=11 // pred_region
        _
      $region16: #{custom_model_forward.1} parent=11 // pred_fallthru
        _
      // Predicated region
      $region17: #{custom_model_forward.1} parent=11 // pred_check
        %p121 = pneg %p77
      $region18: #{custom_model_forward.1} parent=11 // pred_check_branch
        %123 = sbr.rel (%p121) target = $region20
      $region19: #{custom_model_forward.1} parent=11 // pred_region
        _
      $region20: #{custom_model_forward.1} parent=11 // pred_fallthru
        _
    $region12: #{custom_model_forward.1} parent=5 // pred_fallthru
      _
    %p124 = scmp.lt.s32.totalorder %s9, 2
    // Predicated region
    $region21: #{custom_model_forward.1} parent=5 // pred_check
      %p125 = pneg %p124
    $region22: #{custom_model_forward.1} parent=5 // pred_check_branch
      %127 = sbr.rel (%p125) target = $region24
    $region23: #{custom_model_forward.1} parent=5 // pred_region
      // Predicated region
      $region25: #{custom_model_forward.1} parent=23 // pred_check
        %p128 = pneg %p29
      $region26: #{custom_model_forward.1} parent=23 // pred_check_branch
        %130 = sbr.rel (%p128) target = $region28
      $region27: #{custom_model_forward.1} parent=23 // pred_region
        %p131 = scmp.lt.s32.totalorder %s9, 1
        %s132 = scalar_select %p131, %s9, 1
        %s133 = smul.addr %s132, 32
        %s134 = smul.addr %s133, 4
        %s135 = scalar_lea.vmem %s0, %s134
      $region28: #{custom_model_forward.1} parent=23 // pred_fallthru
        _
    $region24: #{custom_model_forward.1} parent=5 // pred_fallthru
      _
    %p136 = scmp.le.s32.totalorder 1, %s9
    %p137 = scmp.lt.s32.totalorder %s9, 3
    %p138 = pnand %p136, %p137
    %p139 = pneg %p138
    // Predicated region
    $region29: #{custom_model_forward.1} parent=5 // pred_check
      _
    $region30: #{custom_model_forward.1} parent=5 // pred_check_branch
      %141 = sbr.rel (%p138) target = $region32
    $region31: #{custom_model_forward.1} parent=5 // pred_region
      %s142 = ssub.s32 %s9, 1
      %p143 = scmp.lt.s32.totalorder %s14, 1
      %s144 = scalar_select %p143, %s14, 1
      %s145 = smul.addr %s144, 32
      %s146 = smul.addr %s145, 4
      %s147 = scalar_lea.vmem %s0, %s146
      %p148 = pneg %p35
      %p149 = pneg %p32
      %p150 = pneg %p56
      %p151 = pneg %p53
      %p152 = pneg %p77
      %p153 = pneg %p74
      %p154 = pneg %p103
      %p155 = pneg %p100
      %p156 = scmp.lt.s32.totalorder %s14, 1
      %s157 = scalar_select %p156, %s14, 1
      %s158 = scalar_lea.vmem %s3, %s157
      %p159 = scmp.lt.s32.totalorder %s14, 1
      %s160 = scalar_select %p159, %s14, 1
      %s161 = smul.addr %s160, 32
      %s162 = smul.addr %s161, 4
      %s163 = scalar_lea.vmem %s0, %s162
      %p164 = scmp.lt.s32.totalorder %s14, 1
      %s165 = scalar_select %p164, %s14, 1
      %s166 = scalar_lea.vmem %s3, %s165
      %v168 = vld [vmem:[%s163] sm:$0xf]
      %v169 = vld [vmem:[%s163 + $0x4] sm:$0xf]
      %v170 = vld [vmem:[%s163 + $0x8] sm:$0xf]
      %v171 = vld [vmem:[%s163 + $0xc] sm:$0xf]
      %v172 = vld [vmem:[%s163 + $0x10] sm:$0xf]
      %v173 = vld [vmem:[%s163 + $0x14] sm:$0xf]
      %v174 = vld [vmem:[%s163 + $0x18] sm:$0xf]
      %v175 = vld [vmem:[%s163 + $0x1c] sm:$0xf]
      %v176 = vld [vmem:[%s163 + $0x20] sm:$0xf]
      %v177 = vld [vmem:[%s163 + $0x24] sm:$0xf]
      %v178 = vld [vmem:[%s163 + $0x28] sm:$0xf]
      %v179 = vld [vmem:[%s163 + $0x2c] sm:$0xf]
      %v180 = vld [vmem:[%s163 + $0x30] sm:$0xf]
      %v181 = vld [vmem:[%s163 + $0x34] sm:$0xf]
      %v182 = vld [vmem:[%s163 + $0x38] sm:$0xf]
      %v183 = vld [vmem:[%s163 + $0x3c] sm:$0xf]
      %v184 = vld [vmem:[%s163 + $0x40] sm:$0xf]
      %v185 = vld [vmem:[%s163 + $0x44] sm:$0xf]
      %v186 = vld [vmem:[%s163 + $0x48] sm:$0xf]
      %v187 = vld [vmem:[%s163 + $0x4c] sm:$0xf]
      %v188 = vld [vmem:[%s163 + $0x50] sm:$0xf]
      %v189 = vld [vmem:[%s163 + $0x54] sm:$0xf]
      %v190 = vld [vmem:[%s163 + $0x58] sm:$0xf]
      %v191 = vld [vmem:[%s163 + $0x5c] sm:$0xf]
      %v192 = vld [vmem:[%s163 + $0x60] sm:$0xf]
      %v193 = vld [vmem:[%s163 + $0x64] sm:$0xf]
      %v194 = vld [vmem:[%s163 + $0x68] sm:$0xf]
      %v195 = vld [vmem:[%s163 + $0x6c] sm:$0xf]
      %v196 = vld [vmem:[%s163 + $0x70] sm:$0xf]
      %v197 = vld [vmem:[%s163 + $0x74] sm:$0xf]
      %v198 = vld [vmem:[%s163 + $0x78] sm:$0xf]
      %v199 = vld [vmem:[%s163 + $0x7c] sm:$0xf]
      %v200 = vld [vmem:[%s1] sm:$0xf]
      %v201 = vld [vmem:[%s1 + $0x4] sm:$0xf]
      %v202 = vld [vmem:[%s1 + $0x8] sm:$0xf]
      %v203 = vld [vmem:[%s1 + $0xc] sm:$0xf]
      %v204 = vld [vmem:[%s1 + $0x10] sm:$0xf]
      %v205 = vld [vmem:[%s1 + $0x14] sm:$0xf]
      %v206 = vld [vmem:[%s1 + $0x18] sm:$0xf]
      %v207 = vld [vmem:[%s1 + $0x1c] sm:$0xf]
      %v208 = vld [vmem:[%s1 + $0x20] sm:$0xf]
      %v209 = vld [vmem:[%s1 + $0x24] sm:$0xf]
      %v210 = vld [vmem:[%s1 + $0x28] sm:$0xf]
      %v211 = vld [vmem:[%s1 + $0x2c] sm:$0xf]
      %v212 = vld [vmem:[%s1 + $0x30] sm:$0xf]
      %v213 = vld [vmem:[%s1 + $0x34] sm:$0xf]
      %v214 = vld [vmem:[%s1 + $0x38] sm:$0xf]
      %v215 = vld [vmem:[%s1 + $0x3c] sm:$0xf]
      %v216 = vld [vmem:[%s2] sm:$0x1]
      %v218 = vlaneseq
      %v219 = vshrl.u32 %v218, 7
      %v220 = vsub.s32 0, %v219
      %v221 = vrot.slane %v216, %v220
      %v255 = vunpack.c.l.b16 %v168
      %v256 = vunpack.c.l.b16 %v169
      %v257 = vunpack.c.l.b16 %v170
      %v258 = vunpack.c.l.b16 %v171
      %v259 = vunpack.c.l.b16 %v172
      %v260 = vunpack.c.l.b16 %v173
      %v261 = vunpack.c.l.b16 %v174
      %v262 = vunpack.c.l.b16 %v175
      %v263 = vunpack.c.l.b16 %v176
      %v264 = vunpack.c.l.b16 %v177
      %v265 = vunpack.c.l.b16 %v178
      %v266 = vunpack.c.l.b16 %v179
      %v267 = vunpack.c.l.b16 %v180
      %v268 = vunpack.c.l.b16 %v181
      %v269 = vunpack.c.l.b16 %v182
      %v270 = vunpack.c.l.b16 %v183
      %v271 = vunpack.c.l.b16 %v184
      %v272 = vunpack.c.l.b16 %v185
      %v273 = vunpack.c.l.b16 %v186
      %v274 = vunpack.c.l.b16 %v187
      %v275 = vunpack.c.l.b16 %v188
      %v276 = vunpack.c.l.b16 %v189
      %v277 = vunpack.c.l.b16 %v190
      %v278 = vunpack.c.l.b16 %v191
      %v279 = vunpack.c.l.b16 %v192
      %v280 = vunpack.c.l.b16 %v193
      %v281 = vunpack.c.l.b16 %v194
      %v282 = vunpack.c.l.b16 %v195
      %v283 = vunpack.c.l.b16 %v196
      %v284 = vunpack.c.l.b16 %v197
      %v285 = vunpack.c.l.b16 %v198
      %v286 = vunpack.c.l.b16 %v199
      %v287 = vpack.c.b16 %v256, %v255
      %v288 = vpack.c.b16 %v258, %v257
      %v289 = vpack.c.b16 %v260, %v259
      %v290 = vpack.c.b16 %v262, %v261
      %v291 = vpack.c.b16 %v264, %v263
      %v292 = vpack.c.b16 %v266, %v265
      %v293 = vpack.c.b16 %v268, %v267
      %v294 = vpack.c.b16 %v270, %v269
      %v295 = vpack.c.b16 %v272, %v271
      %v296 = vpack.c.b16 %v274, %v273
      %v297 = vpack.c.b16 %v276, %v275
      %v298 = vpack.c.b16 %v278, %v277
      %v299 = vpack.c.b16 %v280, %v279
      %v300 = vpack.c.b16 %v282, %v281
      %v301 = vpack.c.b16 %v284, %v283
      %v302 = vpack.c.b16 %v286, %v285
      %v335 = vunpack.c.l.b16 %v200
      %v336 = vunpack.c.l.b16 %v201
      %v337 = vunpack.c.l.b16 %v202
      %v338 = vunpack.c.l.b16 %v203
      %v339 = vunpack.c.l.b16 %v204
      %v340 = vunpack.c.l.b16 %v205
      %v341 = vunpack.c.l.b16 %v206
      %v342 = vunpack.c.l.b16 %v207
      %v343 = vunpack.c.l.b16 %v208
      %v344 = vunpack.c.l.b16 %v209
      %v345 = vunpack.c.l.b16 %v210
      %v346 = vunpack.c.l.b16 %v211
      %v347 = vunpack.c.l.b16 %v212
      %v348 = vunpack.c.l.b16 %v213
      %v349 = vunpack.c.l.b16 %v214
      %v350 = vunpack.c.l.b16 %v215
      %v351 = vpack.c.b16 %v336, %v335
      %v352 = vpack.c.b16 %v338, %v337
      %v353 = vpack.c.b16 %v340, %v339
      %v354 = vpack.c.b16 %v342, %v341
      %v355 = vpack.c.b16 %v344, %v343
      %v356 = vpack.c.b16 %v346, %v345
      %v357 = vpack.c.b16 %v348, %v347
      %v358 = vpack.c.b16 %v350, %v349
      %367 = vmatprep.subr.bf16.mxu0 0
      %368 = vmatpush1.bf16.msra.mxu0 %v351
      %369 = vmatprep.subr.bf16.mxu0 0
      %370 = vmatpush1.bf16.msra.mxu0 %v352
      %371 = vmatprep.subr.bf16.mxu0 0
      %372 = vmatpush1.bf16.msra.mxu0 %v353
      %373 = vmatprep.subr.bf16.mxu0 0
      %374 = vmatpush1.bf16.msra.mxu0 %v354
      %375 = vmatprep.subr.bf16.mxu0 0
      %376 = vmatpush1.bf16.msra.mxu0 %v355
      %377 = vmatprep.subr.bf16.mxu0 0
      %378 = vmatpush1.bf16.msra.mxu0 %v356
      %379 = vmatprep.subr.bf16.mxu0 0
      %380 = vmatpush1.bf16.msra.mxu0 %v357
      %381 = vmatprep.subr.bf16.mxu0 0
      %382 = vmatpush1.bf16.msra.mxu0 %v358
      %383 = vmatprep.subr.bf16.mxu0 0
      %384 = vmatpush1.bf16.msra.mxu0 0
      %385 = vmatprep.subr.bf16.mxu0 0
      %386 = vmatpush1.bf16.msra.mxu0 0
      %387 = vmatprep.subr.bf16.mxu0 0
      %388 = vmatpush1.bf16.msra.mxu0 0
      %389 = vmatprep.subr.bf16.mxu0 0
      %390 = vmatpush1.bf16.msra.mxu0 0
      %391 = vmatprep.subr.bf16.mxu0 0
      %392 = vmatpush1.bf16.msra.mxu0 0
      %393 = vmatprep.subr.bf16.mxu0 0
      %394 = vmatpush1.bf16.msra.mxu0 0
      %395 = vmatprep.subr.bf16.mxu0 0
      %396 = vmatpush1.bf16.msra.mxu0 0
      %397 = vmatprep.subr.bf16.mxu0 0
      %398 = vmatpush1.bf16.msra.mxu0 0
      %399 = vmatprep.mubr.bf16.mxu0 0
      %400 = vmatmul.mubr.bf16.gmra.mrb[0].mxu0 %v287
      %v401 = vpop.f32.mrb[0].mxu0
      %v402 = vadd.f32 %v221, %v401
      %v403 = vpop.f32.mrb[0].mxu0
      %v404 = vpop.f32.mrb[0].mxu0
      %v405 = vadd.f32 %v221, %v404
      %v406 = vpop.f32.mrb[0].mxu0
      %407 = vmatprep.mubr.bf16.mxu0 0
      %408 = vmatmul.mubr.bf16.gmra.mrb[0].mxu0 %v288
      %v409 = vpop.f32.mrb[0].mxu0
      %v410 = vadd.f32 %v221, %v409
      %v411 = vpop.f32.mrb[0].mxu0
      %v412 = vpop.f32.mrb[0].mxu0
      %v413 = vadd.f32 %v221, %v412
      %v414 = vpop.f32.mrb[0].mxu0
      %415 = vmatprep.mubr.bf16.mxu0 0
      %416 = vmatmul.mubr.bf16.gmra.mrb[0].mxu0 %v289
      %v417 = vpop.f32.mrb[0].mxu0
      %v418 = vadd.f32 %v221, %v417
      %v419 = vpop.f32.mrb[0].mxu0
      %v420 = vpop.f32.mrb[0].mxu0
      %v421 = vadd.f32 %v221, %v420
      %v422 = vpop.f32.mrb[0].mxu0
      %423 = vmatprep.mubr.bf16.mxu0 0
      %424 = vmatmul.mubr.bf16.gmra.mrb[0].mxu0 %v290
      %v425 = vpop.f32.mrb[0].mxu0
      %v426 = vadd.f32 %v221, %v425
      %v427 = vpop.f32.mrb[0].mxu0
      %v428 = vpop.f32.mrb[0].mxu0
      %v429 = vadd.f32 %v221, %v428
      %v430 = vpop.f32.mrb[0].mxu0
      %431 = vmatprep.mubr.bf16.mxu0 0
      %432 = vmatmul.mubr.bf16.gmra.mrb[0].mxu0 %v291
      %v433 = vpop.f32.mrb[0].mxu0
      %v434 = vadd.f32 %v221, %v433
      %v435 = vpop.f32.mrb[0].mxu0
      %v436 = vpop.f32.mrb[0].mxu0
      %v437 = vadd.f32 %v221, %v436
      %v438 = vpop.f32.mrb[0].mxu0
      %439 = vmatprep.mubr.bf16.mxu0 0
      %440 = vmatmul.mubr.bf16.gmra.mrb[0].mxu0 %v292
      %v441 = vpop.f32.mrb[0].mxu0
      %v442 = vadd.f32 %v221, %v441
      %v443 = vpop.f32.mrb[0].mxu0
      %v444 = vpop.f32.mrb[0].mxu0
      %v445 = vadd.f32 %v221, %v444
      %v446 = vpop.f32.mrb[0].mxu0
      %447 = vmatprep.mubr.bf16.mxu0 0
      %448 = vmatmul.mubr.bf16.gmra.mrb[0].mxu0 %v293
      %v449 = vpop.f32.mrb[0].mxu0
      %v450 = vadd.f32 %v221, %v449
      %v451 = vpop.f32.mrb[0].mxu0
      %v452 = vpop.f32.mrb[0].mxu0
      %v453 = vadd.f32 %v221, %v452
      %v454 = vpop.f32.mrb[0].mxu0
      %455 = vmatprep.mubr.bf16.mxu0 0
      %456 = vmatmul.mubr.bf16.gmra.mrb[0].mxu0 %v294
      %v457 = vpop.f32.mrb[0].mxu0
      %v458 = vadd.f32 %v221, %v457
      %v459 = vpop.f32.mrb[0].mxu0
      %v460 = vpop.f32.mrb[0].mxu0
      %v461 = vadd.f32 %v221, %v460
      %v462 = vpop.f32.mrb[0].mxu0
      %463 = vmatprep.mubr.bf16.mxu0 0
      %464 = vmatmul.mubr.bf16.gmra.mrb[0].mxu0 %v295
      %v465 = vpop.f32.mrb[0].mxu0
      %v466 = vadd.f32 %v221, %v465
      %v467 = vpop.f32.mrb[0].mxu0
      %v468 = vpop.f32.mrb[0].mxu0
      %v469 = vadd.f32 %v221, %v468
      %v470 = vpop.f32.mrb[0].mxu0
      %471 = vmatprep.mubr.bf16.mxu0 0
      %472 = vmatmul.mubr.bf16.gmra.mrb[0].mxu0 %v296
      %v473 = vpop.f32.mrb[0].mxu0
      %v474 = vadd.f32 %v221, %v473
      %v475 = vpop.f32.mrb[0].mxu0
      %v476 = vpop.f32.mrb[0].mxu0
      %v477 = vadd.f32 %v221, %v476
      %v478 = vpop.f32.mrb[0].mxu0
      %479 = vmatprep.mubr.bf16.mxu0 0
      %480 = vmatmul.mubr.bf16.gmra.mrb[0].mxu0 %v297
      %v481 = vpop.f32.mrb[0].mxu0
      %v482 = vadd.f32 %v221, %v481
      %v483 = vpop.f32.mrb[0].mxu0
      %v484 = vpop.f32.mrb[0].mxu0
      %v485 = vadd.f32 %v221, %v484
      %v486 = vpop.f32.mrb[0].mxu0
      %487 = vmatprep.mubr.bf16.mxu0 0
      %488 = vmatmul.mubr.bf16.gmra.mrb[0].mxu0 %v298
      %v489 = vpop.f32.mrb[0].mxu0
      %v490 = vadd.f32 %v221, %v489
      %v491 = vpop.f32.mrb[0].mxu0
      %v492 = vpop.f32.mrb[0].mxu0
      %v493 = vadd.f32 %v221, %v492
      %v494 = vpop.f32.mrb[0].mxu0
      %495 = vmatprep.mubr.bf16.mxu0 0
      %496 = vmatmul.mubr.bf16.gmra.mrb[0].mxu0 %v299
      %v497 = vpop.f32.mrb[0].mxu0
      %v498 = vadd.f32 %v221, %v497
      %v499 = vpop.f32.mrb[0].mxu0
      %v500 = vpop.f32.mrb[0].mxu0
      %v501 = vadd.f32 %v221, %v500
      %v502 = vpop.f32.mrb[0].mxu0
      %503 = vmatprep.mubr.bf16.mxu0 0
      %504 = vmatmul.mubr.bf16.gmra.mrb[0].mxu0 %v300
      %v505 = vpop.f32.mrb[0].mxu0
      %v506 = vadd.f32 %v221, %v505
      %v507 = vpop.f32.mrb[0].mxu0
      %v508 = vpop.f32.mrb[0].mxu0
      %v509 = vadd.f32 %v221, %v508
      %v510 = vpop.f32.mrb[0].mxu0
      %511 = vmatprep.mubr.bf16.mxu0 0
      %512 = vmatmul.mubr.bf16.gmra.mrb[0].mxu0 %v301
      %v513 = vpop.f32.mrb[0].mxu0
      %v514 = vadd.f32 %v221, %v513
      %v515 = vpop.f32.mrb[0].mxu0
      %v516 = vpop.f32.mrb[0].mxu0
      %v517 = vadd.f32 %v221, %v516
      %v518 = vpop.f32.mrb[0].mxu0
      %519 = vmatprep.mubr.bf16.mxu0 0
      %520 = vmatmul.mubr.bf16.gmra.mrb[0].mxu0 %v302
      %v521 = vpop.f32.mrb[0].mxu0
      %v522 = vadd.f32 %v221, %v521
      %v523 = vpop.f32.mrb[0].mxu0
      %v524 = vpop.f32.mrb[0].mxu0
      %v525 = vadd.f32 %v221, %v524
      %v526 = vpop.f32.mrb[0].mxu0
      %527 = vdwg.mxu0
      %v528 = vmax.f32 %v402, 0.0
      %v529 = vmax.f32 %v405, 0.0
      %v530 = vmax.f32 %v410, 0.0
      %v531 = vmax.f32 %v413, 0.0
      %v532 = vmax.f32 %v418, 0.0
      %v533 = vmax.f32 %v421, 0.0
      %v534 = vmax.f32 %v426, 0.0
      %v535 = vmax.f32 %v429, 0.0
      %v536 = vmax.f32 %v434, 0.0
      %v537 = vmax.f32 %v437, 0.0
      %v538 = vmax.f32 %v442, 0.0
      %v539 = vmax.f32 %v445, 0.0
      %v540 = vmax.f32 %v450, 0.0
      %v541 = vmax.f32 %v453, 0.0
      %v542 = vmax.f32 %v458, 0.0
      %v543 = vmax.f32 %v461, 0.0
      %v544 = vmax.f32 %v466, 0.0
      %v545 = vmax.f32 %v469, 0.0
      %v546 = vmax.f32 %v474, 0.0
      %v547 = vmax.f32 %v477, 0.0
      %v548 = vmax.f32 %v482, 0.0
      %v549 = vmax.f32 %v485, 0.0
      %v550 = vmax.f32 %v490, 0.0
      %v551 = vmax.f32 %v493, 0.0
      %v552 = vmax.f32 %v498, 0.0
      %v553 = vmax.f32 %v501, 0.0
      %v554 = vmax.f32 %v506, 0.0
      %v555 = vmax.f32 %v509, 0.0
      %v556 = vmax.f32 %v514, 0.0
      %v557 = vmax.f32 %v517, 0.0
      %v558 = vmax.f32 %v522, 0.0
      %v559 = vmax.f32 %v525, 0.0
      %v560 = vadd.f32 %v528, %v529
      %v561 = vadd.f32 %v560, %v530
      %v562 = vadd.f32 %v561, %v531
      %v563 = vadd.f32 %v562, %v532
      %v564 = vadd.f32 %v563, %v533
      %v565 = vadd.f32 %v564, %v534
      %v566 = vadd.f32 %v565, %v535
      %v567 = vadd.f32 %v566, %v536
      %v568 = vadd.f32 %v567, %v537
      %v569 = vadd.f32 %v568, %v538
      %v570 = vadd.f32 %v569, %v539
      %v571 = vadd.f32 %v570, %v540
      %v572 = vadd.f32 %v571, %v541
      %v573 = vadd.f32 %v572, %v542
      %v574 = vadd.f32 %v573, %v543
      %v575 = vadd.f32 %v574, %v544
      %v576 = vadd.f32 %v575, %v545
      %v577 = vadd.f32 %v576, %v546
      %v578 = vadd.f32 %v577, %v547
      %v579 = vadd.f32 %v578, %v548
      %v580 = vadd.f32 %v579, %v549
      %v581 = vadd.f32 %v580, %v550
      %v582 = vadd.f32 %v581, %v551
      %v583 = vadd.f32 %v582, %v552
      %v584 = vadd.f32 %v583, %v553
      %v585 = vadd.f32 %v584, %v554
      %v586 = vadd.f32 %v585, %v555
      %v587 = vadd.f32 %v586, %v556
      %v588 = vadd.f32 %v587, %v557
      %v589 = vadd.f32 %v588, %v558
      %v590 = vadd.f32 %v589, %v559
      %v591 = vrot.slane %v590, 4
      %v592 = vadd.f32 %v590, %v591
      %v593 = vrot.slane %v592, 2
      %v594 = vadd.f32 %v592, %v593
      %v595 = vrot.slane %v594, 1
      %v596 = vadd.f32 %v594, %v595
      %597 = vst [vmem:[%s166] sm:$0x1] %v596
      %p598 = scmp.lt.s32.totalorder %s14, 1
      %s599 = scalar_select %p598, %s14, 1
      %s600 = scalar_lea.vmem %s3, %s599
      // Predicated region
      $region33: #{custom_model_forward.1} parent=31 // pred_check
        %p601 = pneg %p100
      $region34: #{custom_model_forward.1} parent=31 // pred_check_branch
        %603 = sbr.rel (%p601) target = $region36
      $region35: #{custom_model_forward.1} parent=31 // pred_region
        _
      $region36: #{custom_model_forward.1} parent=31 // pred_fallthru
        _
    $region32: #{custom_model_forward.1} parent=5 // pred_fallthru
      _
    %p604 = scmp.le.s32.totalorder 2, %s9
    // Predicated region
    $region37: #{custom_model_forward.1} parent=5 // pred_check
      %p605 = pneg %p604
    $region38: #{custom_model_forward.1} parent=5 // pred_check_branch
      %607 = sbr.rel (%p605) target = $region40
    $region39: #{custom_model_forward.1} parent=5 // pred_region
      %s608 = ssub.s32 %s9, 2
      // Predicated region
      $region41: #{custom_model_forward.1} parent=39 // pred_check
        %p609 = pneg %p106
      $region42: #{custom_model_forward.1} parent=39 // pred_check_branch
        %611 = sbr.rel (%p609) target = $region44
      $region43: #{custom_model_forward.1} parent=39 // pred_region
        %p612 = scmp.lt.s32.totalorder %s15, 1
        %s613 = scalar_select %p612, %s15, 1
        %s614 = scalar_lea.vmem %s3, %s613
      $region44: #{custom_model_forward.1} parent=39 // pred_fallthru
        _
    $region40: #{custom_model_forward.1} parent=5 // pred_fallthru
      _
  $region6: #{custom_model_forward.1} parent=0 // loop_footer
    %s13 = sadd.s32 1, %s9
  $region7: #{custom_model_forward.1} parent=0 // loop_footer_branch
    %8 = sbr.rel target = $region3
  $region8: #{custom_model_forward.1} parent=0 // loop_exit
    _

</llo_original>
